<compile_context>
chip_gen: v7x
topology: tpu7x:2x2x1
jax: 0.10.0
libtpu: 0.0.40
codegen_flags: <defaults>
</compile_context>

<pallas_src>
import functools
import math

import jax
import jax.numpy as jnp
from jax import lax
from jax.experimental import pallas as pl
from jax.experimental.pallas import tpu as pltpu


def _round_up(x: int, m: int) -> int:
    return ((x + m - 1) // m) * m


# ---------------------------------------------------------------------------
# Fast path: VMEM-resident table + one-hot MXU gather (small vocabs).
# ---------------------------------------------------------------------------
def _onehot_gather_kernel(tok_ref, table_ref, out_ref, *, scale, vocab):
    ids = tok_ref[...]                                              # (T, 1) int32
    iota = lax.broadcasted_iota(jnp.int32, (ids.shape[0], vocab), 1)
    onehot = (ids == iota).astype(table_ref.dtype)                  # (T, vocab)
    gathered = jnp.dot(onehot, table_ref[...],
                       preferred_element_type=jnp.float32)          # (T, emb) f32
    out_ref[...] = (gathered * scale).astype(out_ref.dtype)


def _token_embedding_onehot(tok_flat, emb_table, *, block_t, scale):
    n_pad = tok_flat.shape[0]
    vocab, emb = emb_table.shape
    tok2d = tok_flat.reshape(n_pad, 1)
    kernel = functools.partial(_onehot_gather_kernel, scale=scale, vocab=vocab)
    return pl.pallas_call(
        kernel,
        out_shape=jax.ShapeDtypeStruct((n_pad, emb), emb_table.dtype),
        grid_spec=pltpu.PrefetchScalarGridSpec(
            num_scalar_prefetch=0,
            grid=(n_pad // block_t,),
            in_specs=[
                pl.BlockSpec((block_t, 1), lambda i: (i, 0)),
                # Constant block index -> table fetched once, stays in VMEM.
                pl.BlockSpec((vocab, emb), lambda i: (0, 0)),
            ],
            out_specs=pl.BlockSpec((block_t, emb), lambda i: (i, 0)),
        ),
        compiler_params=pltpu.CompilerParams(
            # No cross-step state: safe to shard across v7x's two TensorCores.
            dimension_semantics=("parallel",),
        ),
        cost_estimate=pl.CostEstimate(
            flops=2 * n_pad * vocab * emb,
            transcendentals=0,
            bytes_accessed=(vocab * emb + 2 * n_pad * emb)
            * emb_table.dtype.itemsize + n_pad * 4,
        ),
    )(tok2d, emb_table)


# ---------------------------------------------------------------------------
# General path: manual double-buffered row-DMA gather from an HBM table.
# ---------------------------------------------------------------------------
def _dma_gather_kernel(tok_ref, emb_hbm, out_ref, rows, sems, *, scale, block_t):
    i = pl.program_id(0)
    n_steps = pl.num_programs(0)
    slot = i % 2

    def issue(step, slot_idx):
        base = step * block_t
        for t in range(block_t):           # unrolled: BLOCK_T row-DMAs in flight
            idx = tok_ref[base + t]
            pltpu.make_async_copy(
                emb_hbm.at[pl.ds(idx, 1), :],
                rows.at[slot_idx, pl.ds(t, 1), :],
                sems.at[slot_idx, t],
            ).start()

    @pl.when(i == 0)
    def _():                               # prime slot 0 on the first step
        issue(0, 0)

    @pl.when(i + 1 < n_steps)
    def _():                               # prefetch next step's rows (other slot)
        issue(i + 1, 1 - slot)

    for t in range(block_t):               # wait for this step's rows
        pltpu.make_async_copy(
            emb_hbm.at[pl.ds(0, 1), :],
            rows.at[slot, pl.ds(t, 1), :],
            sems.at[slot, t],
        ).wait()

    # Single dense (BLOCK_T, emb) scaled store per step (one wide vst per tile).
    out_ref[...] = (rows[slot].astype(jnp.float32) * scale).astype(out_ref.dtype)


def _token_embedding_dma(tok_flat, emb_table, *, block_t, scale):
    n_pad = tok_flat.shape[0]
    vocab, emb = emb_table.shape
    kernel = functools.partial(_dma_gather_kernel, scale=scale, block_t=block_t)
    return pl.pallas_call(
        kernel,
        out_shape=jax.ShapeDtypeStruct((n_pad, emb), emb_table.dtype),
        grid_spec=pltpu.PrefetchScalarGridSpec(
            num_scalar_prefetch=1,                       # token ids -> SMEM
            grid=(n_pad // block_t,),
            in_specs=[pl.BlockSpec(memory_space=pl.ANY)],  # table stays in HBM
            out_specs=pl.BlockSpec((block_t, emb), lambda i, tok: (i, 0)),
            scratch_shapes=[
                pltpu.VMEM((2, block_t, emb), emb_table.dtype),  # double buffer
                pltpu.SemaphoreType.DMA((2, block_t)),
            ],
        ),
        compiler_params=pltpu.CompilerParams(
            # Cross-step prefetch into the other scratch slot -> keep sequential.
            dimension_semantics=("arbitrary",),
        ),
        cost_estimate=pl.CostEstimate(
            flops=n_pad * emb,
            transcendentals=0,
            bytes_accessed=2 * n_pad * emb * emb_table.dtype.itemsize + n_pad * 4,
        ),
    )(tok_flat, emb_table)


# Tables at or below this footprint / vocab take the VMEM-resident one-hot path.
_ONEHOT_TABLE_BYTES = 4 * 1024 * 1024
_ONEHOT_MAX_VOCAB = 4096


def token_embedding(tokens: jax.Array, emb_table: jax.Array, *,
                    block_tokens: int | None = None,
                    force_dma_gather: bool = False) -> jax.Array:
    """emb_table[tokens] * sqrt(emb); returns tokens.shape + (emb,) in table dtype."""
    vocab, emb = emb_table.shape
    tok_shape = tokens.shape
    tok_flat = tokens.reshape(-1).astype(jnp.int32)
    # PyTorch raises IndexError on out-of-range ids; clamp so the row DMA /
    # one-hot gather always stays in bounds (no silent OOB HBM reads).
    tok_flat = jnp.clip(tok_flat, 0, vocab - 1)
    n = tok_flat.shape[0]

    if block_tokens is None:
        # Amortize ~0.35 us per-grid-step overhead over many tokens, without
        # over-padding tiny inputs.
        # TODO(synk): bucket n_pad across calls to avoid one Mosaic compile per (B, S).
        block_tokens = min(128, _round_up(max(n, 1), 8))
    block_t = max(8, _round_up(block_tokens, 8))
    n_pad = _round_up(max(n, 1), block_t)
    if n_pad != n:
        tok_flat = jnp.pad(tok_flat, (0, n_pad - n))

    scale = math.sqrt(float(emb))
    table_bytes = vocab * emb * emb_table.dtype.itemsize
    use_onehot = (not force_dma_gather
                  and table_bytes <= _ONEHOT_TABLE_BYTES
                  and vocab <= _ONEHOT_MAX_VOCAB)

    if use_onehot:
        out = _token_embedding_onehot(tok_flat, emb_table,
                                      block_t=block_t, scale=scale)
    else:
        out = _token_embedding_dma(tok_flat, emb_table,
                                   block_t=block_t, scale=scale)

    return out[:n].reshape(*tok_shape, emb)


if __name__ == "__main__":
    key = jax.random.PRNGKey(0)
    k_emb, k_tok = jax.random.split(key)

    vocab_size = 64
    emb_size = 32
    batch, seq = 2, 8

    # nn.Embedding default init: N(0, 1)
    emb_table = jax.random.normal(k_emb, (vocab_size, emb_size), dtype=jnp.float32)
    tokens = jax.random.randint(k_tok, (batch, seq), 0, vocab_size, dtype=jnp.int32)

    ref = emb_table[tokens] * math.sqrt(emb_size)

    # Fast path (table resident in VMEM, one-hot MXU gather).
    out_fast = jax.block_until_ready(token_embedding(tokens, emb_table))
    # General path (HBM table, double-buffered manual row-DMA gather),
    # forced here with block_tokens=8 so the 16 tokens span 2 grid steps.
    out_dma = jax.block_until_ready(
        token_embedding(tokens, emb_table, block_tokens=8, force_dma_gather=True))

    assert out_fast.shape == (batch, seq, emb_size)
    assert out_dma.shape == (batch, seq, emb_size)
    assert jnp.allclose(out_fast, ref, atol=1e-5), "one-hot path mismatch vs reference"
    assert jnp.allclose(out_dma, ref, atol=1e-5), "DMA-gather path mismatch vs reference"

    print("KERNEL_OK")
</pallas_src>

<mosaic_0001>
module attributes {stable_mosaic.version = 11 : i64} {
  func.func @_onehot_gather_kernel(%arg0: i32, %arg1: memref<16x1xi32, #tpu.memory_space<vmem>>, %arg2: memref<64x32xf32, #tpu.memory_space<vmem>>, %arg3: memref<16x32xf32, #tpu.memory_space<vmem>>) attributes {dimension_semantics = [#tpu.dimension_semantics<parallel>], iteration_bounds = array<i64: 1>, scalar_prefetch = 0 : i64, scratch_operands = 0 : i64, tpu.core_type = #tpu.core_type<tc>, window_params = [{transform_indices = @transform_0, window_bounds = array<i64: 16, 1>}, {pipeline_mode = #tpu.pipeline_mode<synchronous>, transform_indices = @transform_1, window_bounds = array<i64: 64, 32>}, {transform_indices = @transform_2, window_bounds = array<i64: 16, 32>}]} {
    %c0 = arith.constant 0 : index
    %c0_0 = arith.constant 0 : index
    %0 = vector.load %arg1[%c0, %c0_0] : memref<16x1xi32, #tpu.memory_space<vmem>>, vector<16x1xi32>
    %1 = tpu.iota {dimensions = array<i32: 1>} : vector<16x64xi32>
    %2 = vector.broadcast %0 : vector<16x1xi32> to vector<16x64xi32>
    %3 = arith.cmpi eq, %2, %1 : vector<16x64xi32>
    %4 = arith.extui %3 : vector<16x64xi1> to vector<16x64xi32>
    %5 = arith.sitofp %4 : vector<16x64xi32> to vector<16x64xf32>
    %c0_1 = arith.constant 0 : index
    %c0_2 = arith.constant 0 : index
    %6 = vector.load %arg2[%c0_1, %c0_2] : memref<64x32xf32, #tpu.memory_space<vmem>>, vector<64x32xf32>
    %cst = arith.constant dense<0.000000e+00> : vector<16x32xf32>
    %7 = tpu.matmul %5, %6, %cst {dimension_numbers = #tpu.dot_dimension_numbers<[1], [0], [0], [1], [0, 0, 1, 1], [], []>} : vector<16x64xf32>, vector<64x32xf32>, vector<16x32xf32> -> vector<16x32xf32>
    %cst_3 = arith.constant 5.65685415 : f32
    %8 = vector.broadcast %cst_3 : f32 to vector<16x32xf32>
    %9 = arith.mulf %7, %8 : vector<16x32xf32>
    %c0_4 = arith.constant 0 : index
    %c0_5 = arith.constant 0 : index
    %10 = vector.load %arg3[%c0_4, %c0_5] : memref<16x32xf32, #tpu.memory_space<vmem>>, vector<16x32xf32>
    tpu.vector_store %arg3[%c0_4, %c0_5], %9 {strides = array<i32>} : memref<16x32xf32, #tpu.memory_space<vmem>>, vector<16x32xf32>,
    return
  }
  func.func @transform_0(%arg0: i32) -> (i32, i32) {
    %c0_i32 = arith.constant 0 : i32
    %c0_i32_0 = arith.constant 0 : i32
    return %arg0, %c0_i32 : i32, i32
  }
  func.func @transform_1(%arg0: i32) -> (i32, i32) {
    %c0_i32 = arith.constant 0 : i32
    %c0_i32_0 = arith.constant 0 : i32
    %c0_i32_1 = arith.constant 0 : i32
    return %c0_i32, %c0_i32_0 : i32, i32
  }
  func.func @transform_2(%arg0: i32) -> (i32, i32) {
    %c0_i32 = arith.constant 0 : i32
    %c0_i32_0 = arith.constant 0 : i32
    return %arg0, %c0_i32 : i32, i32
  }
}

</mosaic_0001>

<llo_original>
// kernel: tpu_custom_call.1
$region0: #{tpu_custom_call.1}
  #allocation0 [shape = 'u32[]', space=smem, size = 0x4, offset = 0x4, fixed_abs, tag = 'smem constant byte address 0x4 - core index']
  #allocation1 [shape = 'u32[144,128]{1,0:T(1,128)}', space=vmem, size = 0x12000, scoped, tag = 'internal scratch']
  %s0 = inlined_call_operand.vmem [shape: s32[16,1], index: 0, kind: input, shape index: {}]
  %s1 = inlined_call_operand.vmem [shape: f32[64,32], index: 1, kind: input, shape index: {}]
  %s2 = inlined_call_operand.hbm [shape: f32[16,32], index: 2, kind: output, shape index: {}]
  %s3 = sld [smem:[#allocation0]]
  $region18: #{tpu_custom_call.1} parent=0
    _
  %s5 = ssub.s32 1, %s3
  %s6 = scalar_select 0, %s5, %s3
  $region1: #{tpu_custom_call.1} parent=0
    #allocation2 [shape = 'u8[8192]{0}', space=vmem, size = 0x2000, scoped, tag = 'output window, operand 0, single buffered']
    #allocation3 [shape = 's32[1]{0}', space=sflag, size = 0x4, scoped, tag = 'scoped memory for tpu_custom_call.1']
    %7 = vsyncpa [#allocation3], 0
    // Predicated region
    $region2: #{tpu_custom_call.1} parent=1 // pred_check
      _
    $region3: #{tpu_custom_call.1} parent=1 // pred_check_branch
      %9 = sbr.rel (0) target = $region5
    $region4: #{tpu_custom_call.1} parent=1 // pred_region
      _
    $region5: #{tpu_custom_call.1} parent=1 // pred_fallthru
      _
    // Predicated region
    $region6: #{tpu_custom_call.1} parent=1 // pred_check
      _
    $region7: #{tpu_custom_call.1} parent=1 // pred_check_branch
      %11 = sbr.rel (0) target = $region9
    $region8: #{tpu_custom_call.1} parent=1 // pred_region
      _
    $region9: #{tpu_custom_call.1} parent=1 // pred_fallthru
      _
    %v12 = vld [vmem:[%s0] sm:$0xff]
    %v13 = vld [vmem:[%s0 + $0x8] sm:$0xff]
    %v14 = vlaneseq
    %v15 = vand.u32 %v14, 127
    %16 = vset.pattern.permute.xlu0 0
    %17 = vperm.xlu0 %16, %v12
    %v18 = vpop.permute.xlu0 %17
    %19 = vset.pattern.permute.xlu0 0
    %20 = vperm.xlu0 %19, %v13
    %v21 = vpop.permute.xlu0 %20
    %vm22 = vcmp.eq.s32.totalorder %v18, %v15
    %vm23 = vcmp.eq.s32.totalorder %v21, %v15
    %v24 = vsel %vm22, 1, 0
    %v25 = vsel %vm23, 1, 0
    %v26 = vcvt.s32.f32 %v24
    %v27 = vcvt.s32.f32 %v25
    %v28 = vld [vmem:[%s1] sm:$0xff]
    %v29 = vld [vmem:[%s1 + $0x8] sm:$0xff]
    %v30 = vld [vmem:[%s1 + $0x10] sm:$0xff]
    %v31 = vld [vmem:[%s1 + $0x18] sm:$0xff]
    %v32 = vld [vmem:[%s1 + $0x20] sm:$0xff]
    %v33 = vld [vmem:[%s1 + $0x28] sm:$0xff]
    %v34 = vld [vmem:[%s1 + $0x30] sm:$0xff]
    %v35 = vld [vmem:[%s1 + $0x38] sm:$0xff]
    %vm36 = vcmask 523264
    %v38 = vsel %vm36, %v26, 0
    %v41 = vsel %vm36, %v27, 0
    %43 = vmatprep.subr.mxu0 0.0
    %44 = vmatpush1.msra.mxu0 %v28
    %45 = vmatprep.subr.mxu0 0.0
    %46 = vmatpush1.msra.mxu0 %v29
    %47 = vmatprep.subr.mxu0 0.0
    %48 = vmatpush1.msra.mxu0 %v30
    %49 = vmatprep.subr.mxu0 0.0
    %50 = vmatpush1.msra.mxu0 %v31
    %51 = vmatprep.subr.mxu0 0.0
    %52 = vmatpush1.msra.mxu0 %v32
    %53 = vmatprep.subr.mxu0 0.0
    %54 = vmatpush1.msra.mxu0 %v33
    %55 = vmatprep.subr.mxu0 0.0
    %56 = vmatpush1.msra.mxu0 %v34
    %57 = vmatprep.subr.mxu0 0.0
    %58 = vmatpush1.msra.mxu0 %v35
    %59 = vmatprep.subr.mxu0 0.0
    %60 = vmatpush1.msra.mxu0 0.0
    %61 = vmatprep.subr.mxu0 0.0
    %62 = vmatpush1.msra.mxu0 0.0
    %63 = vmatprep.subr.mxu0 0.0
    %64 = vmatpush1.msra.mxu0 0.0
    %65 = vmatprep.subr.mxu0 0.0
    %66 = vmatpush1.msra.mxu0 0.0
    %67 = vmatprep.subr.mxu0 0.0
    %68 = vmatpush1.msra.mxu0 0.0
    %69 = vmatprep.subr.mxu0 0.0
    %70 = vmatpush1.msra.mxu0 0.0
    %71 = vmatprep.subr.mxu0 0.0
    %72 = vmatpush1.msra.mxu0 0.0
    %73 = vmatprep.subr.mxu0 0.0
    %74 = vmatpush1.msra.mxu0 0.0
    %75 = vmatprep.subr.mxu0 0.0
    %76 = vmatpush1.msra.mxu0 0.0
    %77 = vmatprep.subr.mxu0 0.0
    %78 = vmatpush1.msra.mxu0 0.0
    %79 = vmatprep.subr.mxu0 0.0
    %80 = vmatpush1.msra.mxu0 0.0
    %81 = vmatprep.subr.mxu0 0.0
    %82 = vmatpush1.msra.mxu0 0.0
    %83 = vmatprep.subr.mxu0 0.0
    %84 = vmatpush1.msra.mxu0 0.0
    %85 = vmatprep.subr.mxu0 0.0
    %86 = vmatpush1.msra.mxu0 0.0
    %87 = vmatprep.subr.mxu0 0.0
    %88 = vmatpush1.msra.mxu0 0.0
    %89 = vmatprep.subr.mxu0 0.0
    %90 = vmatpush1.msra.mxu0 0.0
    %91 = vmatprep.subr.mxu0 0.0
    %92 = vmatpush1.msra.mxu0 0.0
    %93 = vmatprep.subr.mxu0 0.0
    %94 = vmatpush1.msra.mxu0 0.0
    %95 = vmatprep.subr.mxu0 0.0
    %96 = vmatpush1.msra.mxu0 0.0
    %97 = vmatprep.subr.mxu0 0.0
    %98 = vmatpush1.msra.mxu0 0.0
    %99 = vmatprep.subr.mxu0 0.0
    %100 = vmatpush1.msra.mxu0 0.0
    %101 = vmatprep.subr.mxu0 0.0
    %102 = vmatpush1.msra.mxu0 0.0
    %103 = vmatprep.subr.mxu0 0.0
    %104 = vmatpush1.msra.mxu0 0.0
    %105 = vmatprep.subr.mxu0 0.0
    %106 = vmatpush1.msra.mxu0 0.0
    %107 = vmatprep.mubr.f32.mxu0 0.0
    %108 = vmatmul.mubr.f32.gmra.mrb[0].mxu0 %v38
    %v109 = vpop.f32.mrb[0].mxu0
    %v110 = vadd.f32 0.0, %v109
    %v111 = vpop.f32.mrb[0].mxu0
    %112 = vmatprep.mubr.f32.mxu0 0.0
    %113 = vmatmul.mubr.f32.gmra.mrb[0].mxu0 %v41
    %v114 = vpop.f32.mrb[0].mxu0
    %v115 = vadd.f32 0.0, %v114
    %v116 = vpop.f32.mrb[0].mxu0
    %117 = vdwg.mxu0
    %v118 = vmul.f32 %v110, 5.656854
    %v119 = vmul.f32 %v115, 5.656854
    %vm120 = vcmask 261120
    %121 = vst.msk [vmem:[#allocation2] sm:$0xff] %vm120, %v118
    %122 = vst.msk [vmem:[#allocation2 + $0x8] sm:$0xff] %vm120, %v119
    // Predicated region
    $region10: #{tpu_custom_call.1} parent=1 // pred_check
      _
    $region11: #{tpu_custom_call.1} parent=1 // pred_check_branch
      %124 = sbr.rel (0) target = $region13
    $region12: #{tpu_custom_call.1} parent=1 // pred_region
      %s126 = ssub.s32 256, 256
      %127 = vsyncadd [#allocation3], %s126
      %s128 = sshll.u32 [#allocation2], 4
      %s129 = int_to_ptr.vmem [resolvable:$true] %s128
      %134 = dma.vmem_to_hbm [thread:$0]  %s129, 256, %s2, [#allocation3], 128, 128, 8
    $region13: #{tpu_custom_call.1} parent=1 // pred_fallthru
      _
    // Predicated region
    $region14: #{tpu_custom_call.1} parent=1 // pred_check
      _
    $region15: #{tpu_custom_call.1} parent=1 // pred_check_branch
      %136 = sbr.rel (0) target = $region17
    $region16: #{tpu_custom_call.1} parent=1 // pred_region
      %137 = dma.done [#allocation3], 256
    $region17: #{tpu_custom_call.1} parent=1 // pred_fallthru
      _
    %138 = vsyncpa [#allocation3], 1

</llo_original>
